<compile_context>
chip_gen: v6e
topology: v6e:2x2x1
jax: 0.10.0
libtpu: 0.0.40
codegen_flags: <defaults>
</compile_context>

<pallas_src>
import jax
import jax.numpy as jnp
import numpy as np
from jax import lax
from jax.experimental import pallas as pl
from jax.experimental.pallas import tpu as pltpu

# ---- config (mirrors the ModelArgs fields MoE.forward uses) ----------------
DIM = 32                 # args.dim  (!= 7168 -> gate has no bias)
MOE_INTER = 16           # args.moe_inter_dim
N_ROUTED = 8             # args.n_routed_experts
N_ACTIVATED = 2          # args.n_activated_experts
N_SHARED = 2             # args.n_shared_experts
ROUTE_SCALE = 1.0        # args.route_scale
# score_func='softmax', n_expert_groups=1 -> no group masking, no bias
BATCH, SEQ = 2, 8

SHARED_INTER = N_SHARED * MOE_INTER                    # 32
ROUTED_COLS = N_ROUTED * MOE_INTER                     # 128 (lane-exact)
NCOLS = ROUTED_COLS + SHARED_INTER                     # 160 (routed + shared)
NCOLS_PAD = ((NCOLS + 127) // 128) * 128               # 256 (lane-tile aligned)


# ---------------------------- fused Pallas kernel ----------------------------
def moe_fused_kernel(x_ref, wg_ref, w13_ref, w2_ref, expand_ref, out_ref):
    """Gate + two-pass top-2 routing + routed & shared experts, fused."""
    x = x_ref[...]                                                       # (Tt, DIM) f32

    # ---- gate: softmax(x @ Wg^T), all f32 so expert selection matches lax.top_k
    logits = jnp.dot(x, wg_ref[...], preferred_element_type=jnp.float32)  # (Tt, E)
    m = jnp.max(logits, axis=-1, keepdims=True)
    ex = jnp.exp(logits - m)
    scores = ex / jnp.sum(ex, axis=-1, keepdims=True)       # exact div (routing parity)

    # ---- two-pass top-2 mask (lowest index wins ties, matches lax.top_k) ----
    eidx = lax.broadcasted_iota(jnp.int32, (1, N_ROUTED), 1).astype(jnp.float32)
    m1 = jnp.max(scores, axis=-1, keepdims=True)
    idx1 = jnp.min(jnp.where(scores == m1, eidx, float(N_ROUTED)),
                   axis=-1, keepdims=True)
    sel1 = eidx == idx1                                                  # (Tt, E)
    masked = jnp.where(sel1, -1.0, scores)                               # scores > 0
    m2 = jnp.max(masked, axis=-1, keepdims=True)
    idx2 = jnp.min(jnp.where(masked == m2, eidx, float(N_ROUTED)),
                   axis=-1, keepdims=True)
    sel2 = eidx == idx2
    dw = scores * jnp.logical_or(sel1, sel2).astype(jnp.float32)         # (Tt, E)
    if ROUTE_SCALE != 1.0:
        dw = dw * ROUTE_SCALE

    # ---- per-column scale from the host-precomputed expand matrix -----------
    # rows 0..E-1: routed column ownership; row E: shared-column indicator (=1.0)
    scale = (jnp.dot(dw, expand_ref[:N_ROUTED, :],
                     preferred_element_type=jnp.float32)
             + expand_ref[N_ROUTED:, :])                                 # (Tt, NCOLS_PAD)

    # ---- all experts (routed + shared): ONE bf16 matmul for [W1|W3] ---------
    xb = x.astype(jnp.bfloat16)
    h13 = jnp.dot(xb, w13_ref[...], preferred_element_type=jnp.float32)  # (Tt, 2*NCOLS_PAD)
    h = jax.nn.silu(h13[:, :NCOLS_PAD]) * h13[:, NCOLS_PAD:]             # f32 elementwise
    out = jnp.dot((h * scale).astype(jnp.bfloat16), w2_ref[...],
                  preferred_element_type=jnp.float32)                    # (Tt, DIM)
    out_ref[...] = out.astype(out_ref.dtype)


# ------------------------------ wrapper / packing ----------------------------
def pack_params(gate_w, w1, w2, w3, sw1, sw2, sw3):
    """PyTorch (out, in) weights -> transposed / concatenated / padded operands."""
    zpad_cols = jnp.zeros((DIM, NCOLS_PAD - NCOLS), jnp.float32)
    zpad_rows = jnp.zeros((NCOLS_PAD - NCOLS, DIM), jnp.float32)

    # routed w1/w3: (E, INTER, DIM) -> (DIM, E*INTER), expert blocks along columns
    w1_cat = jnp.transpose(w1, (2, 0, 1)).reshape(DIM, ROUTED_COLS)
    w3_cat = jnp.transpose(w3, (2, 0, 1)).reshape(DIM, ROUTED_COLS)
    w1_full = jnp.concatenate([w1_cat, sw1.T, zpad_cols], axis=1)        # (DIM, NCOLS_PAD)
    w3_full = jnp.concatenate([w3_cat, sw3.T, zpad_cols], axis=1)        # (DIM, NCOLS_PAD)
    w13 = jnp.concatenate([w1_full, w3_full], axis=1).astype(jnp.bfloat16)

    # routed w2: (E, DIM, INTER) -> (E*INTER, DIM); shared + zero pad rows below
    w2_cat = jnp.transpose(w2, (0, 2, 1)).reshape(ROUTED_COLS, DIM)
    w2_full = jnp.concatenate([w2_cat, sw2.T, zpad_rows],
                              axis=0).astype(jnp.bfloat16)               # (NCOLS_PAD, DIM)

    # routing expand matrix (host-side constant)
    expand = np.zeros((N_ROUTED + 1, NCOLS_PAD), np.float32)
    for e in range(N_ROUTED):
        expand[e, e * MOE_INTER:(e + 1) * MOE_INTER] = 1.0
    expand[N_ROUTED, ROUTED_COLS:NCOLS] = 1.0                            # shared expert = 1.0

    return dict(
        gate_w_t=gate_w.T.astype(jnp.float32),        # (DIM, E)            f32
        w13=w13,                                      # (DIM, 2*NCOLS_PAD)  bf16
        w2p=w2_full,                                  # (NCOLS_PAD, DIM)    bf16
        expand=jnp.asarray(expand),                   # (E+1, NCOLS_PAD)    f32
    )


def moe_forward(x, params, *, tile_t=None):
    B, S, D = x.shape
    T = B * S
    xf = x.reshape(T, D)
    if tile_t is None:
        tile_t = T if T <= 256 else 256                # bigger batches: tile tokens
    assert T % tile_t == 0 and tile_t % 8 == 0
    grid = (T // tile_t,)
    y = pl.pallas_call(
        moe_fused_kernel,
        out_shape=jax.ShapeDtypeStruct((T, D), x.dtype),
        grid=grid,
        in_specs=[
            pl.BlockSpec((tile_t, D), lambda i: (i, 0)),                  # x token tile
            pl.BlockSpec((D, N_ROUTED), lambda i: (0, 0)),                # gate W^T
            pl.BlockSpec((D, 2 * NCOLS_PAD), lambda i: (0, 0)),           # [W1|W3] packed
            pl.BlockSpec((NCOLS_PAD, D), lambda i: (0, 0)),               # W2 packed
            pl.BlockSpec((N_ROUTED + 1, NCOLS_PAD), lambda i: (0, 0)),    # expand matrix
        ],
        out_specs=pl.BlockSpec((tile_t, D), lambda i: (i, 0)),
        compiler_params=pltpu.CompilerParams(
            dimension_semantics=("parallel",)),        # v7x: shard token tiles over TCs
    )(xf, params["gate_w_t"], params["w13"], params["w2p"], params["expand"])
    return y.reshape(B, S, D)


# --------------------------- pure-JAX reference ------------------------------
def reference(x, gate_w, w1, w2, w3, sw1, sw2, sw3):
    B, S, D = x.shape
    xf = x.reshape(-1, D)
    scores = jax.nn.softmax(xf @ gate_w.T, axis=-1)
    vals, idx = jax.lax.top_k(scores, N_ACTIVATED)
    weights = vals * ROUTE_SCALE
    y = jnp.zeros_like(xf)
    for e in range(N_ROUTED):
        h = jax.nn.silu(xf @ w1[e].T) * (xf @ w3[e].T)
        w_e = jnp.sum(jnp.where(idx == e, weights, 0.0), axis=-1, keepdims=True)
        y = y + (h @ w2[e].T) * w_e
    z = (jax.nn.silu(xf @ sw1.T) * (xf @ sw3.T)) @ sw2.T
    return (y + z).reshape(B, S, D)


if __name__ == "__main__":
    key = jax.random.PRNGKey(0)
    ks = jax.random.split(key, 8)
    scale = 0.02

    # deterministic synthetic parameters (PyTorch Linear layout: (out, in))
    gate_w = jax.random.normal(ks[0], (N_ROUTED, DIM), jnp.float32) * scale
    w1 = jax.random.normal(ks[1], (N_ROUTED, MOE_INTER, DIM), jnp.float32) * scale
    w2 = jax.random.normal(ks[2], (N_ROUTED, DIM, MOE_INTER), jnp.float32) * scale
    w3 = jax.random.normal(ks[3], (N_ROUTED, MOE_INTER, DIM), jnp.float32) * scale
    sw1 = jax.random.normal(ks[4], (SHARED_INTER, DIM), jnp.float32) * scale
    sw2 = jax.random.normal(ks[5], (DIM, SHARED_INTER), jnp.float32) * scale
    sw3 = jax.random.normal(ks[6], (SHARED_INTER, DIM), jnp.float32) * scale
    x = jax.random.normal(ks[7], (BATCH, SEQ, DIM), jnp.float32)

    params = pack_params(gate_w, w1, w2, w3, sw1, sw2, sw3)

    y = jax.block_until_ready(moe_forward(x, params))
    y_ref = jax.block_until_ready(reference(x, gate_w, w1, w2, w3, sw1, sw2, sw3))

    assert y.shape == x.shape
    err = float(np.max(np.abs(np.asarray(y) - np.asarray(y_ref))))
    assert np.allclose(np.asarray(y), np.asarray(y_ref), rtol=1e-4, atol=1e-4), err
    print("KERNEL_OK")
</pallas_src>

<mosaic_0001>
module attributes {stable_mosaic.version = 11 : i64} {
  func.func @moe_fused_kernel(%arg0: i32, %arg1: memref<16x32xf32, #tpu.memory_space<vmem>>, %arg2: memref<32x8xf32, #tpu.memory_space<vmem>>, %arg3: memref<32x512xbf16, #tpu.memory_space<vmem>>, %arg4: memref<256x32xbf16, #tpu.memory_space<vmem>>, %arg5: memref<9x256xf32, #tpu.memory_space<vmem>>, %arg6: memref<16x32xf32, #tpu.memory_space<vmem>>) attributes {dimension_semantics = [#tpu.dimension_semantics<parallel>], iteration_bounds = array<i64: 1>, scalar_prefetch = 0 : i64, scratch_operands = 0 : i64, tpu.core_type = #tpu.core_type<tc>, window_params = [{transform_indices = @transform_0, window_bounds = array<i64: 16, 32>}, {pipeline_mode = #tpu.pipeline_mode<synchronous>, transform_indices = @transform_1, window_bounds = array<i64: 32, 8>}, {pipeline_mode = #tpu.pipeline_mode<synchronous>, transform_indices = @transform_2, window_bounds = array<i64: 32, 512>}, {pipeline_mode = #tpu.pipeline_mode<synchronous>, transform_indices = @transform_3, window_bounds = array<i64: 256, 32>}, {pipeline_mode = #tpu.pipeline_mode<synchronous>, transform_indices = @transform_4, window_bounds = array<i64: 9, 256>}, {transform_indices = @transform_5, window_bounds = array<i64: 16, 32>}]} {
    %c0 = arith.constant 0 : index
    %c0_0 = arith.constant 0 : index
    %0 = vector.load %arg1[%c0, %c0_0] : memref<16x32xf32, #tpu.memory_space<vmem>>, vector<16x32xf32>
    %c0_1 = arith.constant 0 : index
    %c0_2 = arith.constant 0 : index
    %1 = vector.load %arg2[%c0_1, %c0_2] : memref<32x8xf32, #tpu.memory_space<vmem>>, vector<32x8xf32>
    %cst = arith.constant dense<0.000000e+00> : vector<16x8xf32>
    %2 = tpu.matmul %0, %1, %cst {dimension_numbers = #tpu.dot_dimension_numbers<[1], [0], [0], [1], [0, 0, 1, 1], [], []>} : vector<16x32xf32>, vector<32x8xf32>, vector<16x8xf32> -> vector<16x8xf32>
    %cst_3 = arith.constant dense<0xFF800000> : vector<16xf32>
    %3 = vector.multi_reduction <maximumf>, %2, %cst_3 [1] : vector<16x8xf32> to vector<16xf32>
    %4 = vector.shape_cast %3 : vector<16xf32> to vector<16x1xf32>
    %5 = vector.broadcast %4 : vector<16x1xf32> to vector<16x8xf32>
    %6 = arith.subf %2, %5 : vector<16x8xf32>
    %7 = math.exp %6 : vector<16x8xf32>
    %cst_4 = arith.constant dense<0.000000e+00> : vector<16xf32>
    %8 = vector.multi_reduction <add>, %7, %cst_4 [1] : vector<16x8xf32> to vector<16xf32>
    %9 = vector.shape_cast %8 : vector<16xf32> to vector<16x1xf32>
    %10 = vector.broadcast %9 : vector<16x1xf32> to vector<16x8xf32>
    %11 = arith.divf %7, %10 : vector<16x8xf32>
    %12 = tpu.iota {dimensions = array<i32: 1>} : vector<1x8xi32>
    %13 = arith.sitofp %12 : vector<1x8xi32> to vector<1x8xf32>
    %cst_5 = arith.constant dense<0xFF800000> : vector<16xf32>
    %14 = vector.multi_reduction <maximumf>, %11, %cst_5 [1] : vector<16x8xf32> to vector<16xf32>
    %15 = vector.shape_cast %14 : vector<16xf32> to vector<16x1xf32>
    %16 = vector.broadcast %15 : vector<16x1xf32> to vector<16x8xf32>
    %17 = arith.cmpf oeq, %11, %16 : vector<16x8xf32>
    %cst_6 = arith.constant 8.000000e+00 : f32
    %18 = vector.shape_cast %13 : vector<1x8xf32> to vector<1x8xf32>
    %19 = vector.broadcast %18 : vector<1x8xf32> to vector<16x8xf32>
    %20 = vector.broadcast %cst_6 : f32 to vector<16x8xf32>
    %21 = arith.select %17, %19, %20 : vector<16x8xi1>, vector<16x8xf32>
    %cst_7 = arith.constant dense<0x7F800000> : vector<16xf32>
    %22 = vector.multi_reduction <minimumf>, %21, %cst_7 [1] : vector<16x8xf32> to vector<16xf32>
    %23 = vector.shape_cast %22 : vector<16xf32> to vector<16x1xf32>
    %24 = vector.broadcast %13 : vector<1x8xf32> to vector<16x8xf32>
    %25 = vector.broadcast %23 : vector<16x1xf32> to vector<16x8xf32>
    %26 = arith.cmpf oeq, %24, %25 : vector<16x8xf32>
    %cst_8 = arith.constant -1.000000e+00 : f32
    %27 = vector.broadcast %cst_8 : f32 to vector<16x8xf32>
    %28 = arith.select %26, %27, %11 : vector<16x8xi1>, vector<16x8xf32>
    %cst_9 = arith.constant dense<0xFF800000> : vector<16xf32>
    %29 = vector.multi_reduction <maximumf>, %28, %cst_9 [1] : vector<16x8xf32> to vector<16xf32>
    %30 = vector.shape_cast %29 : vector<16xf32> to vector<16x1xf32>
    %31 = vector.broadcast %30 : vector<16x1xf32> to vector<16x8xf32>
    %32 = arith.cmpf oeq, %28, %31 : vector<16x8xf32>
    %cst_10 = arith.constant 8.000000e+00 : f32
    %33 = vector.shape_cast %13 : vector<1x8xf32> to vector<1x8xf32>
    %34 = vector.broadcast %33 : vector<1x8xf32> to vector<16x8xf32>
    %35 = vector.broadcast %cst_10 : f32 to vector<16x8xf32>
    %36 = arith.select %32, %34, %35 : vector<16x8xi1>, vector<16x8xf32>
    %cst_11 = arith.constant dense<0x7F800000> : vector<16xf32>
    %37 = vector.multi_reduction <minimumf>, %36, %cst_11 [1] : vector<16x8xf32> to vector<16xf32>
    %38 = vector.shape_cast %37 : vector<16xf32> to vector<16x1xf32>
    %39 = vector.broadcast %13 : vector<1x8xf32> to vector<16x8xf32>
    %40 = vector.broadcast %38 : vector<16x1xf32> to vector<16x8xf32>
    %41 = arith.cmpf oeq, %39, %40 : vector<16x8xf32>
    %42 = arith.ori %26, %41 : vector<16x8xi1>
    %43 = arith.extui %42 : vector<16x8xi1> to vector<16x8xi32>
    %44 = arith.sitofp %43 : vector<16x8xi32> to vector<16x8xf32>
    %45 = arith.mulf %11, %44 : vector<16x8xf32>
    %c0_12 = arith.constant 0 : index
    %c0_13 = arith.constant 0 : index
    %46 = vector.load %arg5[%c0_12, %c0_13] : memref<9x256xf32, #tpu.memory_space<vmem>>, vector<8x256xf32>
    %cst_14 = arith.constant dense<0.000000e+00> : vector<16x256xf32>
    %47 = tpu.matmul %45, %46, %cst_14 {dimension_numbers = #tpu.dot_dimension_numbers<[1], [0], [0], [1], [0, 0, 1, 1], [], []>} : vector<16x8xf32>, vector<8x256xf32>, vector<16x256xf32> -> vector<16x256xf32>
    %c8 = arith.constant 8 : index
    %c0_15 = arith.constant 0 : index
    %48 = vector.load %arg5[%c8, %c0_15] : memref<9x256xf32, #tpu.memory_space<vmem>>, vector<1x256xf32>
    %49 = vector.broadcast %48 : vector<1x256xf32> to vector<16x256xf32>
    %50 = arith.addf %47, %49 : vector<16x256xf32>
    %51 = arith.truncf %0 : vector<16x32xf32> to vector<16x32xbf16>
    %c0_16 = arith.constant 0 : index
    %c0_17 = arith.constant 0 : index
    %52 = vector.load %arg3[%c0_16, %c0_17] : memref<32x512xbf16, #tpu.memory_space<vmem>>, vector<32x512xbf16>
    %cst_18 = arith.constant dense<0.000000e+00> : vector<16x512xf32>
    %53 = tpu.matmul %51, %52, %cst_18 {dimension_numbers = #tpu.dot_dimension_numbers<[1], [0], [0], [1], [0, 0, 1, 1], [], []>} : vector<16x32xbf16>, vector<32x512xbf16>, vector<16x512xf32> -> vector<16x512xf32>
    %54 = vector.extract_strided_slice %53 {offsets = [0, 0], sizes = [16, 256], strides = [1, 1]} : vector<16x512xf32> to vector<16x256xf32>
    %55 = arith.negf %54 : vector<16x256xf32>
    %56 = math.exp %55 : vector<16x256xf32>
    %cst_19 = arith.constant 1.000000e+00 : f32
    %57 = vector.broadcast %cst_19 : f32 to vector<16x256xf32>
    %58 = arith.addf %57, %56 : vector<16x256xf32>
    %59 = arith.divf %57, %58 : vector<16x256xf32>
    %60 = arith.mulf %54, %59 : vector<16x256xf32>
    %61 = vector.extract_strided_slice %53 {offsets = [0, 256], sizes = [16, 256], strides = [1, 1]} : vector<16x512xf32> to vector<16x256xf32>
    %62 = arith.mulf %60, %61 : vector<16x256xf32>
    %63 = arith.mulf %62, %50 : vector<16x256xf32>
    %64 = arith.truncf %63 : vector<16x256xf32> to vector<16x256xbf16>
    %c0_20 = arith.constant 0 : index
    %c0_21 = arith.constant 0 : index
    %65 = vector.load %arg4[%c0_20, %c0_21] : memref<256x32xbf16, #tpu.memory_space<vmem>>, vector<256x32xbf16>
    %cst_22 = arith.constant dense<0.000000e+00> : vector<16x32xf32>
    %66 = tpu.matmul %64, %65, %cst_22 {dimension_numbers = #tpu.dot_dimension_numbers<[1], [0], [0], [1], [0, 0, 1, 1], [], []>} : vector<16x256xbf16>, vector<256x32xbf16>, vector<16x32xf32> -> vector<16x32xf32>
    %c0_23 = arith.constant 0 : index
    %c0_24 = arith.constant 0 : index
    %67 = vector.load %arg6[%c0_23, %c0_24] : memref<16x32xf32, #tpu.memory_space<vmem>>, vector<16x32xf32>
    tpu.vector_store %arg6[%c0_23, %c0_24], %66 {strides = array<i32>} : memref<16x32xf32, #tpu.memory_space<vmem>>, vector<16x32xf32>,
    return
  }
  func.func @transform_0(%arg0: i32) -> (i32, i32) {
    %c0_i32 = arith.constant 0 : i32
    %c0_i32_0 = arith.constant 0 : i32
    return %arg0, %c0_i32 : i32, i32
  }
  func.func @transform_1(%arg0: i32) -> (i32, i32) {
    %c0_i32 = arith.constant 0 : i32
    %c0_i32_0 = arith.constant 0 : i32
    %c0_i32_1 = arith.constant 0 : i32
    return %c0_i32, %c0_i32_0 : i32, i32
  }
  func.func @transform_2(%arg0: i32) -> (i32, i32) {
    %c0_i32 = arith.constant 0 : i32
    %c0_i32_0 = arith.constant 0 : i32
    %c0_i32_1 = arith.constant 0 : i32
    return %c0_i32, %c0_i32_0 : i32, i32
  }
  func.func @transform_3(%arg0: i32) -> (i32, i32) {
    %c0_i32 = arith.constant 0 : i32
    %c0_i32_0 = arith.constant 0 : i32
    %c0_i32_1 = arith.constant 0 : i32
    return %c0_i32, %c0_i32_0 : i32, i32
  }
  func.func @transform_4(%arg0: i32) -> (i32, i32) {
    %c0_i32 = arith.constant 0 : i32
    %c0_i32_0 = arith.constant 0 : i32
    %c0_i32_1 = arith.constant 0 : i32
    return %c0_i32, %c0_i32_0 : i32, i32
  }
  func.func @transform_5(%arg0: i32) -> (i32, i32) {
    %c0_i32 = arith.constant 0 : i32
    %c0_i32_0 = arith.constant 0 : i32
    return %arg0, %c0_i32 : i32, i32
  }
}

</mosaic_0001>

<llo_original>
// kernel: tpu_custom_call.1
$region0: #{tpu_custom_call.1}
  #allocation0 [shape = 'u32[]', space=smem, size = 0x4, offset = 0x4, fixed_abs, tag = 'smem constant byte address 0x4 - core index']
  #allocation1 [shape = 'u32[144,128]{1,0:T(1,128)}', space=vmem, size = 0x12000, scoped, tag = 'internal scratch']
  %s0 = inlined_call_operand.vmem [shape: f32[16,32], index: 0, kind: input, shape index: {}]
  %s1 = inlined_call_operand.vmem [shape: f32[32,8], index: 1, kind: input, shape index: {}]
  %s2 = inlined_call_operand.vmem [shape: bf16[32,512], index: 2, kind: input, shape index: {}]
  %s3 = inlined_call_operand.vmem [shape: bf16[256,32], index: 3, kind: input, shape index: {}]
  %s4 = inlined_call_operand.vmem [shape: f32[9,256], index: 4, kind: input, shape index: {}]
  %s5 = inlined_call_operand.hbm [shape: f32[16,32], index: 5, kind: output, shape index: {}]
  %s6 = sld [smem:[#allocation0]]
  $region30: #{tpu_custom_call.1} parent=0
    _
  %s8 = ssub.s32 1, %s6
  %s9 = scalar_select 0, %s8, %s6
  $region1: #{tpu_custom_call.1} parent=0
    #allocation2 [shape = 'u8[8192]{0}', space=vmem, size = 0x2000, scoped, tag = 'output window, operand 0, single buffered']
    #allocation3 [shape = 's32[1]{0}', space=sflag, size = 0x4, scoped, tag = 'scoped memory for tpu_custom_call.1']
    %10 = vsyncpa [#allocation3], 0
    // Predicated region
    $region2: #{tpu_custom_call.1} parent=1 // pred_check
      _
    $region3: #{tpu_custom_call.1} parent=1 // pred_check_branch
      %12 = sbr.rel (0) target = $region5
    $region4: #{tpu_custom_call.1} parent=1 // pred_region
      _
    $region5: #{tpu_custom_call.1} parent=1 // pred_fallthru
      _
    // Predicated region
    $region6: #{tpu_custom_call.1} parent=1 // pred_check
      _
    $region7: #{tpu_custom_call.1} parent=1 // pred_check_branch
      %14 = sbr.rel (0) target = $region9
    $region8: #{tpu_custom_call.1} parent=1 // pred_region
      _
    $region9: #{tpu_custom_call.1} parent=1 // pred_fallthru
      _
    // Predicated region
    $region10: #{tpu_custom_call.1} parent=1 // pred_check
      _
    $region11: #{tpu_custom_call.1} parent=1 // pred_check_branch
      %16 = sbr.rel (0) target = $region13
    $region12: #{tpu_custom_call.1} parent=1 // pred_region
      _
    $region13: #{tpu_custom_call.1} parent=1 // pred_fallthru
      _
    // Predicated region
    $region14: #{tpu_custom_call.1} parent=1 // pred_check
      _
    $region15: #{tpu_custom_call.1} parent=1 // pred_check_branch
      %18 = sbr.rel (0) target = $region17
    $region16: #{tpu_custom_call.1} parent=1 // pred_region
      _
    $region17: #{tpu_custom_call.1} parent=1 // pred_fallthru
      _
    // Predicated region
    $region18: #{tpu_custom_call.1} parent=1 // pred_check
      _
    $region19: #{tpu_custom_call.1} parent=1 // pred_check_branch
      %20 = sbr.rel (0) target = $region21
    $region20: #{tpu_custom_call.1} parent=1 // pred_region
      _
    $region21: #{tpu_custom_call.1} parent=1 // pred_fallthru
      _
    %v22 = vld [vmem:[%s0] sm:$0xff]
    %v23 = vld [vmem:[%s0 + $0x8] sm:$0xff]
    %v24 = vld [vmem:[%s1] sm:$0xff]
    %v25 = vld [vmem:[%s1 + $0x8] sm:$0xff]
    %v26 = vld [vmem:[%s1 + $0x10] sm:$0xff]
    %v27 = vld [vmem:[%s1 + $0x18] sm:$0xff]
    %vm28 = vcmask 261120
    %v30 = vsel %vm28, %v22, 0
    %v33 = vsel %vm28, %v23, 0
    %35 = vmatprep.subr.mxu0 0.0
    %36 = vmatpush1.msra.mxu0 0.0
    %37 = vmatprep.subr.mxu0 0.0
    %38 = vmatpush1.msra.mxu0 0.0
    %39 = vmatprep.subr.mxu0 0.0
    %40 = vmatpush1.msra.mxu0 0.0
    %41 = vmatprep.subr.mxu0 0.0
    %42 = vmatpush1.msra.mxu0 0.0
    %43 = vmatprep.subr.mxu0 0.0
    %44 = vmatpush1.msra.mxu0 0.0
    %45 = vmatprep.subr.mxu0 0.0
    %46 = vmatpush1.msra.mxu0 0.0
    %47 = vmatprep.subr.mxu0 0.0
    %48 = vmatpush1.msra.mxu0 0.0
    %49 = vmatprep.subr.mxu0 0.0
    %50 = vmatpush1.msra.mxu0 0.0
    %51 = vmatprep.subr.mxu0 0.0
    %52 = vmatpush1.msra.mxu0 0.0
    %53 = vmatprep.subr.mxu0 0.0
    %54 = vmatpush1.msra.mxu0 0.0
    %55 = vmatprep.subr.mxu0 0.0
    %56 = vmatpush1.msra.mxu0 0.0
    %57 = vmatprep.subr.mxu0 0.0
    %58 = vmatpush1.msra.mxu0 0.0
    %59 = vmatprep.subr.mxu0 0.0
    %60 = vmatpush1.msra.mxu0 %v27
    %61 = vmatprep.subr.mxu0 0.0
    %62 = vmatpush1.msra.mxu0 %v26
    %63 = vmatprep.subr.mxu0 0.0
    %64 = vmatpush1.msra.mxu0 %v25
    %65 = vmatprep.subr.mxu0 0.0
    %66 = vmatpush1.msra.mxu0 %v24
    %67 = vmatprep.subr.mxu0 0.0
    %68 = vmatpush2.msra.mxu0 0.0
    %69 = vmatprep.subr.mxu0 0.0
    %70 = vmatpush2.msra.mxu0 0.0
    %71 = vmatprep.subr.mxu0 0.0
    %72 = vmatpush2.msra.mxu0 0.0
    %73 = vmatprep.subr.mxu0 0.0
    %74 = vmatpush2.msra.mxu0 0.0
    %75 = vmatprep.subr.mxu0 0.0
    %76 = vmatpush2.msra.mxu0 0.0
    %77 = vmatprep.subr.mxu0 0.0
    %78 = vmatpush2.msra.mxu0 0.0
    %79 = vmatprep.subr.mxu0 0.0
    %80 = vmatpush2.msra.mxu0 0.0
    %81 = vmatprep.subr.mxu0 0.0
    %82 = vmatpush2.msra.mxu0 0.0
    %83 = vmatprep.subr.mxu0 0.0
    %84 = vmatpush2.msra.mxu0 0.0
    %85 = vmatprep.subr.mxu0 0.0
    %86 = vmatpush2.msra.mxu0 0.0
    %87 = vmatprep.subr.mxu0 0.0
    %88 = vmatpush2.msra.mxu0 0.0
    %89 = vmatprep.subr.mxu0 0.0
    %90 = vmatpush2.msra.mxu0 0.0
    %91 = vmatprep.subr.mxu0 0.0
    %92 = vmatpush2.msra.mxu0 0.0
    %93 = vmatprep.subr.mxu0 0.0
    %94 = vmatpush2.msra.mxu0 0.0
    %95 = vmatprep.subr.mxu0 0.0
    %96 = vmatpush2.msra.mxu0 0.0
    %97 = vmatprep.subr.mxu0 0.0
    %98 = vmatpush2.msra.mxu0 0.0
    %99 = vmatprep.mubr.f32.mxu0 0.0
    %100 = vmatmul.mubr.f32.gmra.mxu0 %v30
    %v101 = vpop.f32.mrf.mxu0
    %v102 = vadd.f32 0.0, %v101
    %v103 = vpop.f32.mrf.mxu0
    %104 = vmatprep.mubr.f32.mxu0 0.0
    %105 = vmatmul.mubr.f32.gmra.mxu0 %v33
    %v106 = vpop.f32.mrf.mxu0
    %v107 = vadd.f32 0.0, %v106
    %v108 = vpop.f32.mrf.mxu0
    %109 = vdwg.mxu0
    %vm110 = vcmask 64512
    %v111 = vsel %vm110, %v102, -inf
    %112 = vmax.xlane.f32.xlu0 %v111
    %v113 = vpop.xlane.xlu0 %112
    %v114 = vsel %vm110, %v107, -inf
    %115 = vmax.xlane.f32.xlu0 %v114
    %v116 = vpop.xlane.xlu0 %115
    %v117 = vsub.f32 %v102, %v113
    %v118 = vsub.f32 %v107, %v116
    %v119 = vmul.f32 %v117, 1.442695
    %v120 = vpow.pop %v119
    %v121 = vmul.f32 %v118, 1.442695
    %v122 = vpow.pop %v121
    %v123 = vsel %vm110, %v120, 0.0
    %124 = vadd.xlane.f32.xlu0 %v123
    %v125 = vpop.xlane.xlu0 %124
    %v126 = vsel %vm110, %v122, 0.0
    %127 = vadd.xlane.f32.xlu0 %v126
    %v128 = vpop.xlane.xlu0 %127
    %v129 = vrcp.pop %v125
    %v130 = vmul.f32 %v120, %v129
    %v131 = vrcp.pop %v128
    %v132 = vmul.f32 %v122, %v131
    %v133 = vlaneseq
    %v134 = vand.u32 %v133, 127
    %v135 = vcvt.s32.f32 %v134
    %v136 = vsel %vm110, %v130, -inf
    %137 = vmax.xlane.f32.xlu0 %v136
    %v138 = vpop.xlane.xlu0 %137
    %v139 = vsel %vm110, %v132, -inf
    %140 = vmax.xlane.f32.xlu0 %v139
    %v141 = vpop.xlane.xlu0 %140
    %vm142 = vcmp.eq.f32.partialorder %v130, %v138
    %vm143 = vcmp.eq.f32.partialorder %v132, %v141
    %v144 = vsel %vm142, %v135, 8.0
    %v145 = vsel %vm143, %v135, 8.0
    %v146 = vsel %vm110, %v144, inf
    %147 = vmin.xlane.f32.xlu0 %v146
    %v148 = vpop.xlane.xlu0 %147
    %v149 = vsel %vm110, %v145, inf
    %150 = vmin.xlane.f32.xlu0 %v149
    %v151 = vpop.xlane.xlu0 %150
    %vm152 = vcmp.eq.f32.partialorder %v135, %v148
    %vm153 = vcmp.eq.f32.partialorder %v135, %v151
    %v154 = vsel %vm152, -1.0, %v130
    %v155 = vsel %vm153, -1.0, %v132
    %v156 = vsel %vm110, %v154, -inf
    %157 = vmax.xlane.f32.xlu0 %v156
    %v158 = vpop.xlane.xlu0 %157
    %v159 = vsel %vm110, %v155, -inf
    %160 = vmax.xlane.f32.xlu0 %v159
    %v161 = vpop.xlane.xlu0 %160
    %vm162 = vcmp.eq.f32.partialorder %v154, %v158
    %vm163 = vcmp.eq.f32.partialorder %v155, %v161
    %v164 = vsel %vm162, %v135, 8.0
    %v165 = vsel %vm163, %v135, 8.0
    %v166 = vsel %vm110, %v164, inf
    %167 = vmin.xlane.f32.xlu0 %v166
    %v168 = vpop.xlane.xlu0 %167
    %v169 = vsel %vm110, %v165, inf
    %170 = vmin.xlane.f32.xlu0 %v169
    %v171 = vpop.xlane.xlu0 %170
    %vm172 = vcmp.eq.f32.partialorder %v135, %v168
    %vm173 = vcmp.eq.f32.partialorder %v135, %v171
    %vm174 = vmor %vm152, %vm172
    %vm175 = vmor %vm153, %vm173
    %v176 = vsel %vm174, 1, 0
    %v177 = vsel %vm175, 1, 0
    %v178 = vcvt.s32.f32 %v176
    %v179 = vcvt.s32.f32 %v177
    %v180 = vmul.f32 %v130, %v178
    %v181 = vmul.f32 %v132, %v179
    %v182 = vld [vmem:[%s4] sm:$0xff]
    %v183 = vld [vmem:[%s4 + $0x8] sm:$0xff]
    %s184 = scalar_lea.vmem %s4, 16
    %v185 = vld [vmem:[%s184] ss:$8 sm:$0x3]
    %v187 = vlaneseq
    %v188 = vshrl.u32 %v187, 7
    %v189 = vsub.s32 0, %v188
    %v190 = vrot.slane %v185, %v189
    %v191 = vlaneseq
    %v192 = vshrl.u32 %v191, 7
    %v193 = vsub.s32 1, %v192
    %v194 = vrot.slane %v185, %v193
    %v198 = vsel %vm110, %v180, 0
    %v201 = vsel %vm110, %v181, 0
    %203 = vmatprep.subr.mxu0 0.0
    %204 = vmatpush1.msra.mxu0 0.0
    %205 = vmatprep.subr.mxu0 0.0
    %206 = vmatpush1.msra.mxu0 0.0
    %207 = vmatprep.subr.mxu0 0.0
    %208 = vmatpush1.msra.mxu0 0.0
    %209 = vmatprep.subr.mxu0 0.0
    %210 = vmatpush1.msra.mxu0 0.0
    %211 = vmatprep.subr.mxu0 0.0
    %212 = vmatpush1.msra.mxu0 0.0
    %213 = vmatprep.subr.mxu0 0.0
    %214 = vmatpush1.msra.mxu0 0.0
    %215 = vmatprep.subr.mxu0 0.0
    %216 = vmatpush1.msra.mxu0 0.0
    %217 = vmatprep.subr.mxu0 0.0
    %218 = vmatpush1.msra.mxu0 0.0
    %219 = vmatprep.subr.mxu0 0.0
    %220 = vmatpush1.msra.mxu0 0.0
    %221 = vmatprep.subr.mxu0 0.0
    %222 = vmatpush1.msra.mxu0 0.0
    %223 = vmatprep.subr.mxu0 0.0
    %224 = vmatpush1.msra.mxu0 0.0
    %225 = vmatprep.subr.mxu0 0.0
    %226 = vmatpush1.msra.mxu0 0.0
    %227 = vmatprep.subr.mxu0 0.0
    %228 = vmatpush1.msra.mxu0 0.0
    %229 = vmatprep.subr.mxu0 0.0
    %230 = vmatpush1.msra.mxu0 0.0
    %231 = vmatprep.subr.mxu0 0.0
    %232 = vmatpush1.msra.mxu0 0.0
    %233 = vmatprep.subr.mxu0 %v183
    %234 = vmatpush1.msra.mxu0 %v182
    %235 = vmatprep.subr.mxu0 0.0
    %236 = vmatpush2.msra.mxu0 0.0
    %237 = vmatprep.subr.mxu0 0.0
    %238 = vmatpush2.msra.mxu0 0.0
    %239 = vmatprep.subr.mxu0 0.0
    %240 = vmatpush2.msra.mxu0 0.0
    %241 = vmatprep.subr.mxu0 0.0
    %242 = vmatpush2.msra.mxu0 0.0
    %243 = vmatprep.subr.mxu0 0.0
    %244 = vmatpush2.msra.mxu0 0.0
    %245 = vmatprep.subr.mxu0 0.0
    %246 = vmatpush2.msra.mxu0 0.0
    %247 = vmatprep.subr.mxu0 0.0
    %248 = vmatpush2.msra.mxu0 0.0
    %249 = vmatprep.subr.mxu0 0.0
    %250 = vmatpush2.msra.mxu0 0.0
    %251 = vmatprep.subr.mxu0 0.0
    %252 = vmatpush2.msra.mxu0 0.0
    %253 = vmatprep.subr.mxu0 0.0
    %254 = vmatpush2.msra.mxu0 0.0
    %255 = vmatprep.subr.mxu0 0.0
    %256 = vmatpush2.msra.mxu0 0.0
    %257 = vmatprep.subr.mxu0 0.0
    %258 = vmatpush2.msra.mxu0 0.0
    %259 = vmatprep.subr.mxu0 0.0
    %260 = vmatpush2.msra.mxu0 0.0
    %261 = vmatprep.subr.mxu0 0.0
    %262 = vmatpush2.msra.mxu0 0.0
    %263 = vmatprep.subr.mxu0 0.0
    %264 = vmatpush2.msra.mxu0 0.0
    %265 = vmatprep.subr.mxu0 0.0
    %266 = vmatpush2.msra.mxu0 0.0
    %267 = vmatprep.mubr.f32.mxu0 0.0
    %268 = vmatmul.mubr.f32.gmra.mxu0 %v198
    %v269 = vpop.f32.mrf.mxu0
    %v270 = vadd.f32 %v190, %v269
    %v271 = vpop.f32.mrf.mxu0
    %v272 = vadd.f32 %v194, %v271
    %273 = vmatprep.mubr.f32.mxu0 0.0
    %274 = vmatmul.mubr.f32.gmra.mxu0 %v201
    %v275 = vpop.f32.mrf.mxu0
    %v276 = vadd.f32 %v190, %v275
    %v277 = vpop.f32.mrf.mxu0
    %v278 = vadd.f32 %v194, %v277
    %279 = vdwg.mxu0
    %v280 = vpack.c.bf16 %v23, %v22
    %v281 = vld [vmem:[%s2] sm:$0xff]
    %v282 = vld [vmem:[%s2 + $0x8] sm:$0xff]
    %v283 = vld [vmem:[%s2 + $0x10] sm:$0xff]
    %v284 = vld [vmem:[%s2 + $0x18] sm:$0xff]
    %v285 = vld [vmem:[%s2 + $0x20] sm:$0xff]
    %v286 = vld [vmem:[%s2 + $0x28] sm:$0xff]
    %v287 = vld [vmem:[%s2 + $0x30] sm:$0xff]
    %v288 = vld [vmem:[%s2 + $0x38] sm:$0xff]
    %v297 = vunpack.c.l.b16 %v281
    %v298 = vunpack.c.h.b16 %v281
    %v299 = vunpack.c.l.b16 %v282
    %v300 = vunpack.c.h.b16 %v282
    %v301 = vunpack.c.l.b16 %v283
    %v302 = vunpack.c.h.b16 %v283
    %v303 = vunpack.c.l.b16 %v284
    %v304 = vunpack.c.h.b16 %v284
    %v305 = vunpack.c.l.b16 %v285
    %v306 = vunpack.c.h.b16 %v285
    %v307 = vunpack.c.l.b16 %v286
    %v308 = vunpack.c.h.b16 %v286
    %v309 = vunpack.c.l.b16 %v287
    %v310 = vunpack.c.h.b16 %v287
    %v311 = vunpack.c.l.b16 %v288
    %v312 = vunpack.c.h.b16 %v288
    %v313 = vpack.c.b16 %v301, %v297
    %v314 = vpack.c.b16 %v302, %v298
    %v315 = vpack.c.b16 %v303, %v299
    %v316 = vpack.c.b16 %v304, %v300
    %v317 = vpack.c.b16 %v309, %v305
    %v318 = vpack.c.b16 %v310, %v306
    %v319 = vpack.c.b16 %v311, %v307
    %v320 = vpack.c.b16 %v312, %v308
    %v330 = vsel %vm28, %v280, 0
    %332 = vmatprep.subr.bf16.mxu0 0
    %333 = vmatpush1.bf16.msra.mxu0 0
    %334 = vmatprep.subr.bf16.mxu0 0
    %335 = vmatpush1.bf16.msra.mxu0 0
    %336 = vmatprep.subr.bf16.mxu0 0
    %337 = vmatpush1.bf16.msra.mxu0 0
    %338 = vmatprep.subr.bf16.mxu0 0
    %339 = vmatpush1.bf16.msra.mxu0 0
    %340 = vmatprep.subr.bf16.mxu0 0
    %341 = vmatpush1.bf16.msra.mxu0 0
    %342 = vmatprep.subr.bf16.mxu0 0
    %343 = vmatpush1.bf16.msra.mxu0 0
    %344 = vmatprep.subr.bf16.mxu0 %v318
    %345 = vmatpush1.bf16.msra.mxu0 %v317
    %346 = vmatprep.subr.bf16.mxu0 %v314
    %347 = vmatpush1.bf16.msra.mxu0 %v313
    %348 = vmatprep.subr.bf16.mxu0 0
    %349 = vmatpush2.bf16.msra.mxu0 0
    %350 = vmatprep.subr.bf16.mxu0 0
    %351 = vmatpush2.bf16.msra.mxu0 0
    %352 = vmatprep.subr.bf16.mxu0 0
    %353 = vmatpush2.bf16.msra.mxu0 0
    %354 = vmatprep.subr.bf16.mxu0 0
    %355 = vmatpush2.bf16.msra.mxu0 0
    %356 = vmatprep.subr.bf16.mxu0 0
    %357 = vmatpush2.bf16.msra.mxu0 0
    %358 = vmatprep.subr.bf16.mxu0 0
    %359 = vmatpush2.bf16.msra.mxu0 0
    %360 = vmatprep.subr.bf16.mxu0 0
    %361 = vmatpush2.bf16.msra.mxu0 0
    %362 = vmatprep.subr.bf16.mxu0 0
    %363 = vmatpush2.bf16.msra.mxu0 0
    %364 = vmatprep.mubr.bf16.mxu0 0
    %365 = vmatmul.mubr.bf16.gmra.mxu0 %v330
    %v366 = vpop.f32.mrf.mxu0
    %v367 = vadd.f32 0.0, %v366
    %v368 = vpop.f32.mrf.mxu0
    %v369 = vadd.f32 0.0, %v368
    %v370 = vpop.f32.mrf.mxu0
    %v371 = vadd.f32 0.0, %v370
    %v372 = vpop.f32.mrf.mxu0
    %v373 = vadd.f32 0.0, %v372
    %374 = vdwg.mxu0
    %375 = vmatprep.subr.bf16.mxu0 0
    %376 = vmatpush1.bf16.msra.mxu0 0
    %377 = vmatprep.subr.bf16.mxu0 0
    %378 = vmatpush1.bf16.msra.mxu0 0
    %379 = vmatprep.subr.bf16.mxu0 0
    %380 = vmatpush1.bf16.msra.mxu0 0
    %381 = vmatprep.subr.bf16.mxu0 0
    %382 = vmatpush1.bf16.msra.mxu0 0
    %383 = vmatprep.subr.bf16.mxu0 0
    %384 = vmatpush1.bf16.msra.mxu0 0
    %385 = vmatprep.subr.bf16.mxu0 0
    %386 = vmatpush1.bf16.msra.mxu0 0
    %387 = vmatprep.subr.bf16.mxu0 %v320
    %388 = vmatpush1.bf16.msra.mxu0 %v319
    %389 = vmatprep.subr.bf16.mxu0 %v316
    %390 = vmatpush1.bf16.msra.mxu0 %v315
    %391 = vmatprep.subr.bf16.mxu0 0
    %392 = vmatpush2.bf16.msra.mxu0 0
    %393 = vmatprep.subr.bf16.mxu0 0
    %394 = vmatpush2.bf16.msra.mxu0 0
    %395 = vmatprep.subr.bf16.mxu0 0
    %396 = vmatpush2.bf16.msra.mxu0 0
    %397 = vmatprep.subr.bf16.mxu0 0
    %398 = vmatpush2.bf16.msra.mxu0 0
    %399 = vmatprep.subr.bf16.mxu0 0
    %400 = vmatpush2.bf16.msra.mxu0 0
    %401 = vmatprep.subr.bf16.mxu0 0
    %402 = vmatpush2.bf16.msra.mxu0 0
    %403 = vmatprep.subr.bf16.mxu0 0
    %404 = vmatpush2.bf16.msra.mxu0 0
    %405 = vmatprep.subr.bf16.mxu0 0
    %406 = vmatpush2.bf16.msra.mxu0 0
    %407 = vmatprep.mubr.bf16.mxu0 0
    %408 = vmatmul.mubr.bf16.gmra.mxu0 %v330
    %v409 = vpop.f32.mrf.mxu0
    %v410 = vadd.f32 0.0, %v409
    %v411 = vpop.f32.mrf.mxu0
    %v412 = vadd.f32 0.0, %v411
    %v413 = vpop.f32.mrf.mxu0
    %v414 = vadd.f32 0.0, %v413
    %v415 = vpop.f32.mrf.mxu0
    %v416 = vadd.f32 0.0, %v415
    %417 = vdwg.mxu0
    %v418 = vxor.u32 %v367, 2147483648
    %v419 = vxor.u32 %v369, 2147483648
    %v420 = vxor.u32 %v371, 2147483648
    %v421 = vxor.u32 %v373, 2147483648
    %v422 = vmul.f32 %v418, 1.442695
    %v423 = vpow.pop %v422
    %v424 = vmul.f32 %v419, 1.442695
    %v425 = vpow.pop %v424
    %v426 = vmul.f32 %v420, 1.442695
    %v427 = vpow.pop %v426
    %v428 = vmul.f32 %v421, 1.442695
    %v429 = vpow.pop %v428
    %v430 = vadd.f32 %v423, 1.0
    %v431 = vadd.f32 %v425, 1.0
    %v432 = vadd.f32 %v427, 1.0
    %v433 = vadd.f32 %v429, 1.0
    %v434 = vrcp.pop %v430
    %v435 = vmul.f32 1.0, %v434
    %v436 = vrcp.pop %v431
    %v437 = vmul.f32 1.0, %v436
    %v438 = vrcp.pop %v432
    %v439 = vmul.f32 1.0, %v438
    %v440 = vrcp.pop %v433
    %v441 = vmul.f32 1.0, %v440
    %v442 = vmul.f32 %v367, %v435
    %v443 = vmul.f32 %v369, %v437
    %v444 = vmul.f32 %v371, %v439
    %v445 = vmul.f32 %v373, %v441
    %v446 = vmul.f32 %v442, %v410
    %v447 = vmul.f32 %v443, %v412
    %v448 = vmul.f32 %v444, %v414
    %v449 = vmul.f32 %v445, %v416
    %v450 = vmul.f32 %v446, %v270
    %v451 = vmul.f32 %v447, %v272
    %v452 = vmul.f32 %v448, %v276
    %v453 = vmul.f32 %v449, %v278
    %v454 = vpack.c.bf16 %v452, %v450
    %v455 = vpack.c.bf16 %v453, %v451
    %v456 = vld [vmem:[%s3] sm:$0xf]
    %v457 = vld [vmem:[%s3 + $0x4] sm:$0xf]
    %v458 = vld [vmem:[%s3 + $0x8] sm:$0xf]
    %v459 = vld [vmem:[%s3 + $0xc] sm:$0xf]
    %v460 = vld [vmem:[%s3 + $0x10] sm:$0xf]
    %v461 = vld [vmem:[%s3 + $0x14] sm:$0xf]
    %v462 = vld [vmem:[%s3 + $0x18] sm:$0xf]
    %v463 = vld [vmem:[%s3 + $0x1c] sm:$0xf]
    %v464 = vld [vmem:[%s3 + $0x20] sm:$0xf]
    %v465 = vld [vmem:[%s3 + $0x24] sm:$0xf]
    %v466 = vld [vmem:[%s3 + $0x28] sm:$0xf]
    %v467 = vld [vmem:[%s3 + $0x2c] sm:$0xf]
    %v468 = vld [vmem:[%s3 + $0x30] sm:$0xf]
    %v469 = vld [vmem:[%s3 + $0x34] sm:$0xf]
    %v470 = vld [vmem:[%s3 + $0x38] sm:$0xf]
    %v471 = vld [vmem:[%s3 + $0x3c] sm:$0xf]
    %v472 = vld [vmem:[%s3 + $0x40] sm:$0xf]
    %v473 = vld [vmem:[%s3 + $0x44] sm:$0xf]
    %v474 = vld [vmem:[%s3 + $0x48] sm:$0xf]
    %v475 = vld [vmem:[%s3 + $0x4c] sm:$0xf]
    %v476 = vld [vmem:[%s3 + $0x50] sm:$0xf]
    %v477 = vld [vmem:[%s3 + $0x54] sm:$0xf]
    %v478 = vld [vmem:[%s3 + $0x58] sm:$0xf]
    %v479 = vld [vmem:[%s3 + $0x5c] sm:$0xf]
    %v480 = vld [vmem:[%s3 + $0x60] sm:$0xf]
    %v481 = vld [vmem:[%s3 + $0x64] sm:$0xf]
    %v482 = vld [vmem:[%s3 + $0x68] sm:$0xf]
    %v483 = vld [vmem:[%s3 + $0x6c] sm:$0xf]
    %v484 = vld [vmem:[%s3 + $0x70] sm:$0xf]
    %v485 = vld [vmem:[%s3 + $0x74] sm:$0xf]
    %v486 = vld [vmem:[%s3 + $0x78] sm:$0xf]
    %v487 = vld [vmem:[%s3 + $0x7c] sm:$0xf]
    %v520 = vunpack.c.l.b16 %v456
    %v521 = vunpack.c.l.b16 %v457
    %v522 = vunpack.c.l.b16 %v458
    %v523 = vunpack.c.l.b16 %v459
    %v524 = vunpack.c.l.b16 %v460
    %v525 = vunpack.c.l.b16 %v461
    %v526 = vunpack.c.l.b16 %v462
    %v527 = vunpack.c.l.b16 %v463
    %v528 = vunpack.c.l.b16 %v464
    %v529 = vunpack.c.l.b16 %v465
    %v530 = vunpack.c.l.b16 %v466
    %v531 = vunpack.c.l.b16 %v467
    %v532 = vunpack.c.l.b16 %v468
    %v533 = vunpack.c.l.b16 %v469
    %v534 = vunpack.c.l.b16 %v470
    %v535 = vunpack.c.l.b16 %v471
    %v536 = vunpack.c.l.b16 %v472
    %v537 = vunpack.c.l.b16 %v473
    %v538 = vunpack.c.l.b16 %v474
    %v539 = vunpack.c.l.b16 %v475
    %v540 = vunpack.c.l.b16 %v476
    %v541 = vunpack.c.l.b16 %v477
    %v542 = vunpack.c.l.b16 %v478
    %v543 = vunpack.c.l.b16 %v479
    %v544 = vunpack.c.l.b16 %v480
    %v545 = vunpack.c.l.b16 %v481
    %v546 = vunpack.c.l.b16 %v482
    %v547 = vunpack.c.l.b16 %v483
    %v548 = vunpack.c.l.b16 %v484
    %v549 = vunpack.c.l.b16 %v485
    %v550 = vunpack.c.l.b16 %v486
    %v551 = vunpack.c.l.b16 %v487
    %v552 = vpack.c.b16 %v521, %v520
    %v553 = vpack.c.b16 %v523, %v522
    %v554 = vpack.c.b16 %v525, %v524
    %v555 = vpack.c.b16 %v527, %v526
    %v556 = vpack.c.b16 %v529, %v528
    %v557 = vpack.c.b16 %v531, %v530
    %v558 = vpack.c.b16 %v533, %v532
    %v559 = vpack.c.b16 %v535, %v534
    %v560 = vpack.c.b16 %v537, %v536
    %v561 = vpack.c.b16 %v539, %v538
    %v562 = vpack.c.b16 %v541, %v540
    %v563 = vpack.c.b16 %v543, %v542
    %v564 = vpack.c.b16 %v545, %v544
    %v565 = vpack.c.b16 %v547, %v546
    %v566 = vpack.c.b16 %v549, %v548
    %v567 = vpack.c.b16 %v551, %v550
    %584 = vmatprep.subr.bf16.mxu0 0
    %585 = vmatpush1.bf16.msra.mxu0 %v559
    %586 = vmatprep.subr.bf16.mxu0 0
    %587 = vmatpush1.bf16.msra.mxu0 %v558
    %588 = vmatprep.subr.bf16.mxu0 0
    %589 = vmatpush1.bf16.msra.mxu0 %v557
    %590 = vmatprep.subr.bf16.mxu0 0
    %591 = vmatpush1.bf16.msra.mxu0 %v556
    %592 = vmatprep.subr.bf16.mxu0 0
    %593 = vmatpush1.bf16.msra.mxu0 %v555
    %594 = vmatprep.subr.bf16.mxu0 0
    %595 = vmatpush1.bf16.msra.mxu0 %v554
    %596 = vmatprep.subr.bf16.mxu0 0
    %597 = vmatpush1.bf16.msra.mxu0 %v553
    %598 = vmatprep.subr.bf16.mxu0 0
    %599 = vmatpush1.bf16.msra.mxu0 %v552
    %600 = vmatprep.subr.bf16.mxu0 0
    %601 = vmatpush2.bf16.msra.mxu0 %v567
    %602 = vmatprep.subr.bf16.mxu0 0
    %603 = vmatpush2.bf16.msra.mxu0 %v566
    %604 = vmatprep.subr.bf16.mxu0 0
    %605 = vmatpush2.bf16.msra.mxu0 %v565
    %606 = vmatprep.subr.bf16.mxu0 0
    %607 = vmatpush2.bf16.msra.mxu0 %v564
    %608 = vmatprep.subr.bf16.mxu0 0
    %609 = vmatpush2.bf16.msra.mxu0 %v563
    %610 = vmatprep.subr.bf16.mxu0 0
    %611 = vmatpush2.bf16.msra.mxu0 %v562
    %612 = vmatprep.subr.bf16.mxu0 0
    %613 = vmatpush2.bf16.msra.mxu0 %v561
    %614 = vmatprep.subr.bf16.mxu0 0
    %615 = vmatpush2.bf16.msra.mxu0 %v560
    %616 = vmatprep.mubr.bf16.mxu0 %v455
    %617 = vmatmul.mubr.bf16.gmra.mxu0 %v454
    %v618 = vpop.f32.mrf.mxu0
    %v619 = vadd.f32 0.0, %v618
    %v620 = vpop.f32.mrf.mxu0
    %v621 = vpop.f32.mrf.mxu0
    %v622 = vadd.f32 0.0, %v621
    %v623 = vpop.f32.mrf.mxu0
    %624 = vdwg.mxu0
    %625 = vst.msk [vmem:[#allocation2] sm:$0xff] %vm28, %v619
    %626 = vst.msk [vmem:[#allocation2 + $0x8] sm:$0xff] %vm28, %v622
    // Predicated region
    $region22: #{tpu_custom_call.1} parent=1 // pred_check
      _
    $region23: #{tpu_custom_call.1} parent=1 // pred_check_branch
      %628 = sbr.rel (0) target = $region25
    $region24: #{tpu_custom_call.1} parent=1 // pred_region
      %s630 = ssub.s32 256, 256
      %631 = vsyncadd [#allocation3], %s630
      %s632 = sshll.u32 [#allocation2], 4
      %s633 = int_to_ptr.vmem [resolvable:$true] %s632
      %638 = dma.vmem_to_hbm [thread:$0]  %s633, 256, %s5, [#allocation3], 128, 128, 8
    $region25: #{tpu_custom_call.1} parent=1 // pred_fallthru
      _
    // Predicated region
    $region26: #{tpu_custom_call.1} parent=1 // pred_check
      _
    $region27: #{tpu_custom_call.1} parent=1 // pred_check_branch
      %640 = sbr.rel (0) target = $region29
    $region28: #{tpu_custom_call.1} parent=1 // pred_region
      %641 = dma.done [#allocation3], 256
    $region29: #{tpu_custom_call.1} parent=1 // pred_fallthru
      _
    %642 = vsyncpa [#allocation3], 1

</llo_original>
